<compile_context>
chip_gen: v7x
topology: tpu7x:2x2x1
jax: 0.10.0
libtpu: 0.0.40
codegen_flags: <defaults>
</compile_context>

<pallas_src>
import functools

import jax
import jax.numpy as jnp
from jax.experimental import pallas as pl
from jax.experimental.pallas import tpu as pltpu

_LANE = 128
_FUSED_SLAB_BYTES = 3 * 1024 * 1024   # per-batch-element VMEM slab budget (fused path)
_TILE_BYTES = 4 * 1024 * 1024         # per-buffer tile budget (two-pass fallback)
_VMEM_LIMIT = 48 * 1024 * 1024        # explicit scoped-VMEM limit (< 64 MiB -> v7x safe)
_MXU_MIN_C = 64                       # route the sSE channel sum to the MXU at/above this C
_MAX_LANE_CHUNKS = 128                # bounds the unrolled per-lane accumulation in pass 1


def _round_up(v, m):
    return (v + m - 1) // m * m


def _cse_gate(pooled, w1t, b1, w2k, b2):
    """Tiny cSE excitation MLP on the VPU.  pooled: (B, C) f32 -> (B, C) f32 gate."""
    hid = jnp.sum(pooled[:, :, None] * w1t[None, :, :], axis=1) + b1   # (B, Cr)
    hid = jnp.maximum(hid, 0.0)
    lin = jnp.sum(hid[:, None, :] * w2k[None, :, :], axis=2) + b2      # (B, C)
    return jax.nn.sigmoid(lin)


# ---------------------------------------------------------------------------
# Fused single-pass kernel: x is read and written exactly once per element.
# ---------------------------------------------------------------------------
def scse_fused_kernel(x_ref, w1t_ref, b1_ref, w2k_ref, b2_ref, ws_ref, bs_ref,
                      o_ref, *, inv_hw, use_mxu):
    nb = x_ref.shape[0]
    x = x_ref[...]                                                    # (nb, C, HW)

    # Global average pool (f32 accumulation) + tiny cSE gate on the VPU.
    pooled = jnp.sum(x, axis=2, dtype=jnp.float32) * inv_hw           # (nb, C)
    cse = _cse_gate(pooled, w1t_ref[...], b1_ref[...], w2k_ref[...], b2_ref[...])
    cse = cse.astype(x.dtype)[:, :, None]                             # (nb, C, 1)

    if use_mxu:
        # sSE channel reduction on the MXU: one (1, C) x (C, HW) matmul per
        # batch element (nb is capped in the wrapper to bound this unroll).
        for i in range(nb):
            xi = x[i]                                                 # (C, HW)
            s = jax.lax.dot_general(ws_ref[...], xi, (((1,), (0,)), ((), ())),
                                    preferred_element_type=jnp.float32)   # (1, HW)
            sse = jax.nn.sigmoid(s + bs_ref[...]).astype(x.dtype)     # (1, HW)
            gate = cse[i] + sse                                       # (C, HW)
            o_ref[i] = (xi * gate).astype(o_ref.dtype)
    else:
        # Small C: broadcast-multiply + sublane reduce on the VPU.
        s = jnp.sum(x * ws_ref[...][None], axis=1, keepdims=True,
                    dtype=jnp.float32)                                # (nb, 1, HW)
        sse = jax.nn.sigmoid(s + bs_ref[...][None]).astype(x.dtype)   # (nb, 1, HW)
        gate = cse + sse                                              # (nb, C, HW)
        o_ref[...] = (x * gate).astype(o_ref.dtype)


# ---------------------------------------------------------------------------
# Two-pass fallback for slabs that do not fit the fused VMEM budget.
# ---------------------------------------------------------------------------
def cse_gate_kernel(x_ref, w1t_ref, b1_ref, w2k_ref, b2_ref, gate_ref, acc_ref,
                    *, inv_hw, hw, ragged):
    """Pass 1: global average pool accumulated over HW tiles + cSE gate."""
    h = pl.program_id(1)
    thw = x_ref.shape[2]

    @pl.when(h == 0)
    def _():
        acc_ref[...] = jnp.zeros_like(acc_ref)

    x = x_ref[0]                                                      # (C, thw)
    if ragged:
        # The last HW tile extends past the array; OOB block reads are
        # undefined, so mask them out before accumulating.
        lane = h * thw + jax.lax.broadcasted_iota(jnp.int32, x.shape, 1)
        x = jnp.where(lane < hw, x, jnp.zeros_like(x))

    # Per-lane partial sums (plain VALU adds); cross-lane reduce only once in
    # the epilogue so the XLU stays out of the inner loop.
    part = x[:, 0:_LANE].astype(jnp.float32)
    for j in range(1, thw // _LANE):
        part = part + x[:, j * _LANE:(j + 1) * _LANE].astype(jnp.float32)
    acc_ref[...] += part                                              # (C, 128)

    @pl.when(h == pl.num_programs(1) - 1)
    def _():
        pooled = (jnp.sum(acc_ref[...], axis=1) * inv_hw)[None, :]    # (1, C)
        cse = _cse_gate(pooled, w1t_ref[...], b1_ref[...], w2k_ref[...], b2_ref[...])
        gate_ref[...] = cse[:, :, None].astype(gate_ref.dtype)        # (1, C, 1)


def scse_apply_kernel(x_ref, gate_ref, ws_ref, bs_ref, o_ref, *, use_mxu):
    """Pass 2: per-pixel sSE gate + fused apply x * (cse + sse)."""
    x = x_ref[0]                                                      # (C, thw)
    if use_mxu:
        s = jax.lax.dot_general(ws_ref[...], x, (((1,), (0,)), ((), ())),
                                preferred_element_type=jnp.float32)   # (1, thw)
    else:
        s = jnp.sum(x * ws_ref[...], axis=0, keepdims=True,
                    dtype=jnp.float32)                                # (1, thw)
    sse = jax.nn.sigmoid(s + bs_ref[...]).astype(x.dtype)             # (1, thw)
    gate = gate_ref[0] + sse                                          # (C, thw)
    o_ref[0] = (x * gate).astype(o_ref.dtype)


# ---------------------------------------------------------------------------
# Wrapper
# ---------------------------------------------------------------------------
def scse_forward(x_nchw, w1, b1, w2, b2, ws, bs, *,
                 fused_slab_bytes=_FUSED_SLAB_BYTES, tile_bytes=_TILE_BYTES):
    """x_nchw: (N, C, H, W).  Conv weights in PyTorch 1x1-conv layout (out_ch, in_ch)."""
    N, C, H, W = x_nchw.shape
    HW = H * W
    Cr = w1.shape[0]
    dtype = x_nchw.dtype
    itemsize = jnp.dtype(dtype).itemsize
    use_mxu = C >= _MXU_MIN_C

    x = x_nchw.reshape(N, C, HW)            # free reshape; no pad / slice copies

    # Tiny weights: pre-layout / pre-cast so the kernels never transpose or re-cast.
    f32 = jnp.float32
    w1t = w1.astype(f32).T.reshape(C, Cr)   # (C, Cr)
    b1r = b1.astype(f32).reshape(1, Cr)
    w2k = w2.astype(f32).reshape(C, Cr)     # (C, Cr)
    b2r = b2.astype(f32).reshape(1, C)
    bsr = bs.astype(f32).reshape(1, 1)
    ws_k = (ws.astype(dtype).reshape(1, C) if use_mxu
            else ws.astype(dtype).reshape(C, 1))

    # VMEM footprint of one batch element's (C, HW) slab (sublane/lane padded).
    sub = 32 // itemsize                    # 8 sublanes for f32, 16 for bf16, 32 for int8
    c_pad = _round_up(C, sub)
    hw_pad = _round_up(HW, _LANE)
    vmem_per_elem = c_pad * hw_pad * itemsize

    inv_hw = 1.0 / float(HW)

    def cparams(sem):
        return pltpu.CompilerParams(dimension_semantics=sem,
                                    vmem_limit_bytes=_VMEM_LIMIT)

    # ------------------------------------------------------------------ fused
    if vmem_per_elem <= fused_slab_bytes:
        # Pack batch elements per block, but keep >= 2 parallel blocks when
        # N >= 2 so both v7x TensorCores get work.
        nb = max(1, min(fused_slab_bytes // vmem_per_elem, (N + 1) // 2))
        if use_mxu:
            nb = min(nb, 8)                 # bound the per-element MXU unroll
        nb = int(min(nb, N))
        grid = ((N + nb - 1) // nb,)        # ragged last batch block is fine

        xmap = lambda n: (n, 0, 0)
        cmap = lambda n: (0, 0)

        out = pl.pallas_call(
            functools.partial(scse_fused_kernel, inv_hw=inv_hw, use_mxu=use_mxu),
            out_shape=jax.ShapeDtypeStruct((N, C, HW), dtype),
            grid_spec=pltpu.PrefetchScalarGridSpec(
                num_scalar_prefetch=0,
                grid=grid,
                in_specs=[
                    pl.BlockSpec((nb, C, HW), xmap),
                    pl.BlockSpec((C, Cr), cmap),
                    pl.BlockSpec((1, Cr), cmap),
                    pl.BlockSpec((C, Cr), cmap),
                    pl.BlockSpec((1, C), cmap),
                    pl.BlockSpec(ws_k.shape, cmap),
                    pl.BlockSpec((1, 1), cmap),
                ],
                out_specs=pl.BlockSpec((nb, C, HW), xmap),
            ),
            compiler_params=cparams(("parallel",)),
            cost_estimate=pl.CostEstimate(
                flops=int(5 * N * C * HW),
                transcendentals=int(N * (HW + 2 * C)),
                bytes_accessed=int(2 * N * C * HW * itemsize)),
        )(x, w1t, b1r, w2k, b2r, ws_k, bsr)
        return out.reshape(N, C, H, W)

    # --------------------------------------------------------------- two-pass
    # TODO(synk): for extreme channel counts where c_pad*128*itemsize exceeds
    # tile_bytes, a channel-tiled variant would shrink VMEM further; such
    # shapes still run here with one oversized lane tile.
    thw = (tile_bytes // (c_pad * itemsize)) // _LANE * _LANE
    thw = max(_LANE, min(thw, hw_pad, _LANE * _MAX_LANE_CHUNKS))
    n_hw = (HW + thw - 1) // thw
    ragged = (HW % thw) != 0
    grid = (N, n_hw)

    x_spec = pl.BlockSpec((1, C, thw), lambda n, h: (n, 0, h))
    gate_spec = pl.BlockSpec((1, C, 1), lambda n, h: (n, 0, 0))
    cmap2 = lambda n, h: (0, 0)

    # Pass 1: cSE gate (HW is a reduction axis -> 'arbitrary').
    gate = pl.pallas_call(
        functools.partial(cse_gate_kernel, inv_hw=inv_hw, hw=HW, ragged=ragged),
        out_shape=jax.ShapeDtypeStruct((N, C, 1), dtype),
        grid_spec=pltpu.PrefetchScalarGridSpec(
            num_scalar_prefetch=0,
            grid=grid,
            in_specs=[
                x_spec,
                pl.BlockSpec((C, Cr), cmap2),
                pl.BlockSpec((1, Cr), cmap2),
                pl.BlockSpec((C, Cr), cmap2),
                pl.BlockSpec((1, C), cmap2),
            ],
            out_specs=gate_spec,
            scratch_shapes=[pltpu.VMEM((C, _LANE), jnp.float32)],
        ),
        compiler_params=cparams(("parallel", "arbitrary")),
        cost_estimate=pl.CostEstimate(
            flops=int(N * C * HW),
            transcendentals=int(2 * N * C),
            bytes_accessed=int(N * C * HW * itemsize)),
    )(x, w1t, b1r, w2k, b2r)

    # Pass 2: sSE gate + fused apply (independent blocks -> both 'parallel').
    out = pl.pallas_call(
        functools.partial(scse_apply_kernel, use_mxu=use_mxu),
        out_shape=jax.ShapeDtypeStruct((N, C, HW), dtype),
        grid_spec=pltpu.PrefetchScalarGridSpec(
            num_scalar_prefetch=0,
            grid=grid,
            in_specs=[
                x_spec,
                gate_spec,
                pl.BlockSpec(ws_k.shape, cmap2),
                pl.BlockSpec((1, 1), cmap2),
            ],
            out_specs=x_spec,
        ),
        compiler_params=cparams(("parallel", "parallel")),
        cost_estimate=pl.CostEstimate(
            flops=int(4 * N * C * HW),
            transcendentals=int(N * HW),
            bytes_accessed=int(2 * N * C * HW * itemsize)),
    )(x, gate, ws_k, bsr)
    return out.reshape(N, C, H, W)


# ---------------------------------------------------------------------------
# Reference + tests
# ---------------------------------------------------------------------------
def scse_reference(x, w1, b1, w2, b2, ws, bs):
    """Plain-JAX mirror of the PyTorch SCSEModule.forward (for validation)."""
    hi = jax.lax.Precision.HIGHEST
    pooled = x.mean(axis=(2, 3), keepdims=True)                               # (N,C,1,1)
    h = jnp.einsum("nchw,oc->nohw", pooled, w1, precision=hi) + b1[None, :, None, None]
    h = jax.nn.relu(h)
    c = jnp.einsum("nchw,oc->nohw", h, w2, precision=hi) + b2[None, :, None, None]
    cse = jax.nn.sigmoid(c)
    s = jnp.einsum("nchw,oc->nohw", x, ws, precision=hi) + bs[None, :, None, None]
    sse = jax.nn.sigmoid(s)
    return x * cse + x * sse


if __name__ == "__main__":
    def run_case(N, C, H, W, reduction=16, rtol=1e-5, atol=1e-5, **kw):
        Cr = max(C // reduction, 1)
        key = jax.random.PRNGKey(0)
        kx, k1, k2, k3, k4, k5, k6 = jax.random.split(key, 7)
        x = jax.random.normal(kx, (N, C, H, W), dtype=jnp.float32)
        w1 = 0.5 * jax.random.normal(k1, (Cr, C), dtype=jnp.float32)
        b1 = 0.1 * jax.random.normal(k2, (Cr,), dtype=jnp.float32)
        w2 = 0.5 * jax.random.normal(k3, (C, Cr), dtype=jnp.float32)
        b2 = 0.1 * jax.random.normal(k4, (C,), dtype=jnp.float32)
        ws = 0.5 * jax.random.normal(k5, (1, C), dtype=jnp.float32)
        bs = 0.1 * jax.random.normal(k6, (1,), dtype=jnp.float32)

        out = jax.block_until_ready(scse_forward(x, w1, b1, w2, b2, ws, bs, **kw))
        ref = scse_reference(x, w1, b1, w2, b2, ws, bs)
        assert out.shape == (N, C, H, W)
        assert jnp.allclose(out, ref, rtol=rtol, atol=atol), \
            f"mismatch vs reference for case {(N, C, H, W)}"

    # Fused single-pass path, VPU sSE (C < 64), aligned HW.
    run_case(2, 4, 16, 16)
    # Fused path, ragged batch block (N=3, nb=2) + non-128-multiple HW.
    run_case(3, 4, 12, 12)
    # Fused path, MXU sSE (C >= 64); looser tolerance for MXU matmul rounding.
    run_case(2, 64, 8, 8, rtol=5e-2, atol=5e-2)
    # Forced two-pass fallback (exact HW tiling).
    run_case(2, 4, 16, 16, fused_slab_bytes=0)
    # Forced two-pass fallback with a ragged (masked) HW tile.
    run_case(1, 4, 10, 10, fused_slab_bytes=0)

    print("KERNEL_OK")
</pallas_src>

<mosaic_0001>
module attributes {stable_mosaic.version = 11 : i64} {
  func.func @scse_fused_kernel(%arg0: i32, %arg1: memref<1x4x256xf32, #tpu.memory_space<vmem>>, %arg2: memref<4x1xf32, #tpu.memory_space<vmem>>, %arg3: memref<1x1xf32, #tpu.memory_space<vmem>>, %arg4: memref<4x1xf32, #tpu.memory_space<vmem>>, %arg5: memref<1x4xf32, #tpu.memory_space<vmem>>, %arg6: memref<4x1xf32, #tpu.memory_space<vmem>>, %arg7: memref<1x1xf32, #tpu.memory_space<vmem>>, %arg8: memref<1x4x256xf32, #tpu.memory_space<vmem>>) attributes {dimension_semantics = [#tpu.dimension_semantics<parallel>], iteration_bounds = array<i64: 2>, scalar_prefetch = 0 : i64, scratch_operands = 0 : i64, tpu.core_type = #tpu.core_type<tc>, window_params = [{transform_indices = @transform_0, window_bounds = array<i64: 1, 4, 256>}, {pipeline_mode = #tpu.pipeline_mode<synchronous>, transform_indices = @transform_1, window_bounds = array<i64: 4, 1>}, {pipeline_mode = #tpu.pipeline_mode<synchronous>, transform_indices = @transform_2, window_bounds = array<i64: 1, 1>}, {pipeline_mode = #tpu.pipeline_mode<synchronous>, transform_indices = @transform_3, window_bounds = array<i64: 4, 1>}, {pipeline_mode = #tpu.pipeline_mode<synchronous>, transform_indices = @transform_4, window_bounds = array<i64: 1, 4>}, {pipeline_mode = #tpu.pipeline_mode<synchronous>, transform_indices = @transform_5, window_bounds = array<i64: 4, 1>}, {pipeline_mode = #tpu.pipeline_mode<synchronous>, transform_indices = @transform_6, window_bounds = array<i64: 1, 1>}, {transform_indices = @transform_7, window_bounds = array<i64: 1, 4, 256>}]} {
    %c0 = arith.constant 0 : index
    %c0_0 = arith.constant 0 : index
    %c0_1 = arith.constant 0 : index
    %0 = vector.load %arg1[%c0, %c0_0, %c0_1] : memref<1x4x256xf32, #tpu.memory_space<vmem>>, vector<1x4x256xf32>
    %cst = arith.constant dense<0.000000e+00> : vector<1x4xf32>
    %1 = vector.multi_reduction <add>, %0, %cst [2] : vector<1x4x256xf32> to vector<1x4xf32>
    %cst_2 = arith.constant 3.906250e-03 : f32
    %2 = vector.broadcast %cst_2 : f32 to vector<1x4xf32>
    %3 = arith.mulf %1, %2 : vector<1x4xf32>
    %c0_3 = arith.constant 0 : index
    %c0_4 = arith.constant 0 : index
    %4 = vector.load %arg2[%c0_3, %c0_4] : memref<4x1xf32, #tpu.memory_space<vmem>>, vector<4x1xf32>
    %c0_5 = arith.constant 0 : index
    %c0_6 = arith.constant 0 : index
    %5 = vector.load %arg3[%c0_5, %c0_6] : memref<1x1xf32, #tpu.memory_space<vmem>>, vector<1x1xf32>
    %c0_7 = arith.constant 0 : index
    %c0_8 = arith.constant 0 : index
    %6 = vector.load %arg4[%c0_7, %c0_8] : memref<4x1xf32, #tpu.memory_space<vmem>>, vector<4x1xf32>
    %c0_9 = arith.constant 0 : index
    %c0_10 = arith.constant 0 : index
    %7 = vector.load %arg5[%c0_9, %c0_10] : memref<1x4xf32, #tpu.memory_space<vmem>>, vector<1x4xf32>
    %8 = vector.shape_cast %3 : vector<1x4xf32> to vector<1x4x1xf32>
    %9 = vector.shape_cast %4 : vector<4x1xf32> to vector<1x4x1xf32>
    %10 = arith.mulf %8, %9 : vector<1x4x1xf32>
    %cst_11 = arith.constant dense<0.000000e+00> : vector<1x1xf32>
    %11 = vector.multi_reduction <add>, %10, %cst_11 [1] : vector<1x4x1xf32> to vector<1x1xf32>
    %12 = arith.addf %11, %5 : vector<1x1xf32>
    %cst_12 = arith.constant 0.000000e+00 : f32
    %13 = vector.broadcast %cst_12 : f32 to vector<1x1xf32>
    %14 = arith.maximumf %12, %13 : vector<1x1xf32>
    %15 = vector.shape_cast %14 : vector<1x1xf32> to vector<1x1x1xf32>
    %16 = vector.shape_cast %6 : vector<4x1xf32> to vector<1x4x1xf32>
    %17 = vector.broadcast %15 : vector<1x1x1xf32> to vector<1x4x1xf32>
    %18 = arith.mulf %17, %16 : vector<1x4x1xf32>
    %cst_13 = arith.constant dense<0.000000e+00> : vector<1x4xf32>
    %19 = vector.multi_reduction <add>, %18, %cst_13 [2] : vector<1x4x1xf32> to vector<1x4xf32>
    %20 = arith.addf %19, %7 : vector<1x4xf32>
    %21 = arith.negf %20 : vector<1x4xf32>
    %22 = math.exp %21 : vector<1x4xf32>
    %cst_14 = arith.constant 1.000000e+00 : f32
    %23 = vector.broadcast %cst_14 : f32 to vector<1x4xf32>
    %24 = arith.addf %23, %22 : vector<1x4xf32>
    %25 = arith.divf %23, %24 : vector<1x4xf32>
    %26 = vector.shape_cast %25 : vector<1x4xf32> to vector<1x4x1xf32>
    %c0_15 = arith.constant 0 : index
    %c0_16 = arith.constant 0 : index
    %27 = vector.load %arg6[%c0_15, %c0_16] : memref<4x1xf32, #tpu.memory_space<vmem>>, vector<4x1xf32>
    %28 = vector.shape_cast %27 : vector<4x1xf32> to vector<1x4x1xf32>
    %29 = vector.broadcast %28 : vector<1x4x1xf32> to vector<1x4x256xf32>
    %30 = arith.mulf %0, %29 : vector<1x4x256xf32>
    %cst_17 = arith.constant dense<0.000000e+00> : vector<1x256xf32>
    %31 = vector.multi_reduction <add>, %30, %cst_17 [1] : vector<1x4x256xf32> to vector<1x256xf32>
    %32 = vector.shape_cast %31 : vector<1x256xf32> to vector<1x1x256xf32>
    %c0_18 = arith.constant 0 : index
    %c0_19 = arith.constant 0 : index
    %33 = vector.load %arg7[%c0_18, %c0_19] : memref<1x1xf32, #tpu.memory_space<vmem>>, vector<1x1xf32>
    %34 = vector.shape_cast %33 : vector<1x1xf32> to vector<1x1x1xf32>
    %35 = vector.broadcast %34 : vector<1x1x1xf32> to vector<1x1x256xf32>
    %36 = arith.addf %32, %35 : vector<1x1x256xf32>
    %37 = arith.negf %36 : vector<1x1x256xf32>
    %38 = math.exp %37 : vector<1x1x256xf32>
    %cst_20 = arith.constant 1.000000e+00 : f32
    %39 = vector.broadcast %cst_20 : f32 to vector<1x1x256xf32>
    %40 = arith.addf %39, %38 : vector<1x1x256xf32>
    %41 = arith.divf %39, %40 : vector<1x1x256xf32>
    %42 = vector.broadcast %26 : vector<1x4x1xf32> to vector<1x4x256xf32>
    %43 = vector.broadcast %41 : vector<1x1x256xf32> to vector<1x4x256xf32>
    %44 = arith.addf %42, %43 : vector<1x4x256xf32>
    %45 = arith.mulf %0, %44 : vector<1x4x256xf32>
    %c0_21 = arith.constant 0 : index
    %c0_22 = arith.constant 0 : index
    %c0_23 = arith.constant 0 : index
    %46 = vector.load %arg8[%c0_21, %c0_22, %c0_23] : memref<1x4x256xf32, #tpu.memory_space<vmem>>, vector<1x4x256xf32>
    tpu.vector_store %arg8[%c0_21, %c0_22, %c0_23], %45 {strides = array<i32>} : memref<1x4x256xf32, #tpu.memory_space<vmem>>, vector<1x4x256xf32>,
    return
  }
  func.func @transform_0(%arg0: i32) -> (i32, i32, i32) {
    %c0_i32 = arith.constant 0 : i32
    %c0_i32_0 = arith.constant 0 : i32
    %c0_i32_1 = arith.constant 0 : i32
    return %arg0, %c0_i32, %c0_i32_0 : i32, i32, i32
  }
  func.func @transform_1(%arg0: i32) -> (i32, i32) {
    %c0_i32 = arith.constant 0 : i32
    %c0_i32_0 = arith.constant 0 : i32
    %c0_i32_1 = arith.constant 0 : i32
    return %c0_i32, %c0_i32_0 : i32, i32
  }
  func.func @transform_2(%arg0: i32) -> (i32, i32) {
    %c0_i32 = arith.constant 0 : i32
    %c0_i32_0 = arith.constant 0 : i32
    %c0_i32_1 = arith.constant 0 : i32
    return %c0_i32, %c0_i32_0 : i32, i32
  }
  func.func @transform_3(%arg0: i32) -> (i32, i32) {
    %c0_i32 = arith.constant 0 : i32
    %c0_i32_0 = arith.constant 0 : i32
    %c0_i32_1 = arith.constant 0 : i32
    return %c0_i32, %c0_i32_0 : i32, i32
  }
  func.func @transform_4(%arg0: i32) -> (i32, i32) {
    %c0_i32 = arith.constant 0 : i32
    %c0_i32_0 = arith.constant 0 : i32
    %c0_i32_1 = arith.constant 0 : i32
    return %c0_i32, %c0_i32_0 : i32, i32
  }
  func.func @transform_5(%arg0: i32) -> (i32, i32) {
    %c0_i32 = arith.constant 0 : i32
    %c0_i32_0 = arith.constant 0 : i32
    %c0_i32_1 = arith.constant 0 : i32
    return %c0_i32, %c0_i32_0 : i32, i32
  }
  func.func @transform_6(%arg0: i32) -> (i32, i32) {
    %c0_i32 = arith.constant 0 : i32
    %c0_i32_0 = arith.constant 0 : i32
    %c0_i32_1 = arith.constant 0 : i32
    return %c0_i32, %c0_i32_0 : i32, i32
  }
  func.func @transform_7(%arg0: i32) -> (i32, i32, i32) {
    %c0_i32 = arith.constant 0 : i32
    %c0_i32_0 = arith.constant 0 : i32
    %c0_i32_1 = arith.constant 0 : i32
    return %arg0, %c0_i32, %c0_i32_0 : i32, i32, i32
  }
}

</mosaic_0001>

<llo_original>
// kernel: tpu_custom_call.1
$region0: #{tpu_custom_call.1}
  #allocation0 [shape = 'u32[]', space=smem, size = 0x4, offset = 0x4, fixed_abs, tag = 'smem constant byte address 0x4 - core index']
  #allocation1 [shape = 'u32[144,128]{1,0:T(1,128)}', space=vmem, size = 0x12000, scoped, tag = 'internal scratch']
  #allocation2 [shape = 'f32[1,1]{1,0:T(1,128)S(1)}', space=vmem, size = 0x200, scoped, tag = 'scoped memory for tpu_custom_call.1']
  #allocation3 [shape = 'f32[1,1]{1,0:T(1,128)S(1)}', space=vmem, size = 0x200, scoped, tag = 'scoped memory for tpu_custom_call.1']
  %s0 = inlined_call_operand.vmem [shape: f32[2,4,256], index: 0, kind: input, shape index: {}]
  %s1 = inlined_call_operand.vmem [shape: f32[4,1], index: 1, kind: input, shape index: {}]
  %s2 = inlined_call_operand.<no memory space> [shape: f32[1,1], index: 2, kind: input, shape index: {}]
  %s3 = inlined_call_operand.vmem [shape: f32[4,1], index: 3, kind: input, shape index: {}]
  %s4 = inlined_call_operand.vmem [shape: f32[1,4], index: 4, kind: input, shape index: {}]
  %s5 = inlined_call_operand.vmem [shape: f32[4,1], index: 5, kind: input, shape index: {}]
  %s6 = inlined_call_operand.<no memory space> [shape: f32[1,1], index: 6, kind: input, shape index: {}]
  %s7 = inlined_call_operand.hbm [shape: f32[2,4,256], index: 7, kind: output, shape index: {}]
  %s8 = sld [smem:[#allocation0]]
  $region61: #{tpu_custom_call.1} parent=0
    _
  %s10 = ssub.s32 1, %s8
  %s11 = scalar_select 0, %s10, %s8
  %v12 = vstv %s2
  %13 = vst [vmem:[#allocation2] sm:$0x1] %v12
  %v14 = vstv %s6
  %15 = vst [vmem:[#allocation3] sm:$0x1] %v14
  $region1: #{tpu_custom_call.1} parent=0
    #allocation4 [shape = 'u8[8192]{0}', space=vmem, size = 0x2000, scoped, tag = 'output window, operand 0']
    #allocation5 [shape = 's32[2]{0}', space=sflag, size = 0x8, scoped, tag = 'scoped memory for tpu_custom_call.1']
    %16 = vsyncpa [#allocation5], 0
    %s17 = scalar_lea.sflag [#allocation5], 1
    %18 = vsyncpa %s17, 0
    loop: start=0, step=1, limit=4
    $region2: #{tpu_custom_call.1} parent=1 // loop_pre_header
      _
    $region3: #{tpu_custom_call.1} parent=1 // loop_header
      %s20 = sphi 0, %s24
      %p21 = scmp.ge.s32.totalorder %s20, 4
      %s30 = sphi 0, %s32
      %s33 = sphi 0, %s30
      %s34 = sphi 0, %s33
      %s50 = sphi 0, %s34
      %s54 = sphi 0, %s54
      %s56 = sphi 0, %s54
      %s57 = sphi 0, %s56
      %s71 = sphi 0, %s57
      %s75 = sphi 0, %s75
      %s77 = sphi 0, %s75
      %s78 = sphi 0, %s77
      %s92 = sphi 0, %s78
      %s96 = sphi 0, %s96
      %s98 = sphi 0, %s96
      %s99 = sphi 0, %s98
      %s113 = sphi 0, %s99
      %s117 = sphi 0, %s117
      %s119 = sphi 0, %s117
      %s120 = sphi 0, %s119
      %s134 = sphi 0, %s120
      %s138 = sphi 0, %s138
      %s140 = sphi 0, %s138
      %s141 = sphi 0, %s140
      %s155 = sphi 0, %s141
      %s159 = sphi 0, %s159
      %s161 = sphi 0, %s159
      %s162 = sphi 0, %s161
      %s176 = sphi 0, %s162
      %s182 = sphi 0, %s184
      %s185 = sphi 0, %s182
      %s186 = sphi 0, %s185
      %s202 = sphi 0, %s186
    $region4: #{tpu_custom_call.1} parent=1 // loop_header_branch
      %23 = sbr.rel (%p21) target = $region8
    $region5: #{tpu_custom_call.1} parent=1 // loop_body
      %s25 = ssub.s32 %s20, 1
      %s26 = ssub.s32 %s20, 2
      %s27 = sadd.s32 %s20, 1
      %s28 = ssub.s32 %s20, %s27
      %p29 = scmp.eq.s32.totalorder %s28, 0
      %s31 = sadd.s32 %s30, 1
      %s32 = scalar_select %p29, %s30, %s31
      %p35 = pneg %p29
      %p36 = scmp.eq.s32.totalorder %s20, 1
      %p37 = por %p35, %p36
      %p38 = scmp.ne.s32.totalorder %s30, %s33
      %p39 = scmp.eq.s32.totalorder %s20, 0
      %p40 = por %p38, %p39
      %p41 = scmp.ne.s32.totalorder %s30, %s33
      %p42 = scmp.eq.s32.totalorder %s25, 1
      %p43 = por %p41, %p42
      %p44 = scmp.ne.s32.totalorder %s33, %s34
      %p45 = scmp.eq.s32.totalorder %s25, 0
      %p46 = por %p44, %p45
      %p47 = scmp.ne.s32.totalorder %s33, %s34
      %p48 = scmp.eq.s32.totalorder %s26, 1
      %p49 = por %p47, %p48
      %p51 = scmp.ne.s32.totalorder %s34, %s50
      %p52 = scmp.eq.s32.totalorder %s26, 0
      %p53 = por %p51, %p52
      %s55 = sadd.s32 %s54, 1
      %p58 = scmp.eq.s32.totalorder %s20, 1
      %p59 = scmp.ne.s32.totalorder %s54, %s56
      %p60 = scmp.eq.s32.totalorder %s20, 0
      %p61 = por %p59, %p60
      %p62 = scmp.ne.s32.totalorder %s54, %s56
      %p63 = scmp.eq.s32.totalorder %s25, 1
      %p64 = por %p62, %p63
      %p65 = scmp.ne.s32.totalorder %s56, %s57
      %p66 = scmp.eq.s32.totalorder %s25, 0
      %p67 = por %p65, %p66
      %p68 = scmp.ne.s32.totalorder %s56, %s57
      %p69 = scmp.eq.s32.totalorder %s26, 1
      %p70 = por %p68, %p69
      %p72 = scmp.ne.s32.totalorder %s57, %s71
      %p73 = scmp.eq.s32.totalorder %s26, 0
      %p74 = por %p72, %p73
      %s76 = sadd.s32 %s75, 1
      %p79 = scmp.eq.s32.totalorder %s20, 1
      %p80 = scmp.ne.s32.totalorder %s75, %s77
      %p81 = scmp.eq.s32.totalorder %s20, 0
      %p82 = por %p80, %p81
      %p83 = scmp.ne.s32.totalorder %s75, %s77
      %p84 = scmp.eq.s32.totalorder %s25, 1
      %p85 = por %p83, %p84
      %p86 = scmp.ne.s32.totalorder %s77, %s78
      %p87 = scmp.eq.s32.totalorder %s25, 0
      %p88 = por %p86, %p87
      %p89 = scmp.ne.s32.totalorder %s77, %s78
      %p90 = scmp.eq.s32.totalorder %s26, 1
      %p91 = por %p89, %p90
      %p93 = scmp.ne.s32.totalorder %s78, %s92
      %p94 = scmp.eq.s32.totalorder %s26, 0
      %p95 = por %p93, %p94
      %s97 = sadd.s32 %s96, 1
      %p100 = scmp.eq.s32.totalorder %s20, 1
      %p101 = scmp.ne.s32.totalorder %s96, %s98
      %p102 = scmp.eq.s32.totalorder %s20, 0
      %p103 = por %p101, %p102
      %p104 = scmp.ne.s32.totalorder %s96, %s98
      %p105 = scmp.eq.s32.totalorder %s25, 1
      %p106 = por %p104, %p105
      %p107 = scmp.ne.s32.totalorder %s98, %s99
      %p108 = scmp.eq.s32.totalorder %s25, 0
      %p109 = por %p107, %p108
      %p110 = scmp.ne.s32.totalorder %s98, %s99
      %p111 = scmp.eq.s32.totalorder %s26, 1
      %p112 = por %p110, %p111
      %p114 = scmp.ne.s32.totalorder %s99, %s113
      %p115 = scmp.eq.s32.totalorder %s26, 0
      %p116 = por %p114, %p115
      %s118 = sadd.s32 %s117, 1
      %p121 = scmp.eq.s32.totalorder %s20, 1
      %p122 = scmp.ne.s32.totalorder %s117, %s119
      %p123 = scmp.eq.s32.totalorder %s20, 0
      %p124 = por %p122, %p123
      %p125 = scmp.ne.s32.totalorder %s117, %s119
      %p126 = scmp.eq.s32.totalorder %s25, 1
      %p127 = por %p125, %p126
      %p128 = scmp.ne.s32.totalorder %s119, %s120
      %p129 = scmp.eq.s32.totalorder %s25, 0
      %p130 = por %p128, %p129
      %p131 = scmp.ne.s32.totalorder %s119, %s120
      %p132 = scmp.eq.s32.totalorder %s26, 1
      %p133 = por %p131, %p132
      %p135 = scmp.ne.s32.totalorder %s120, %s134
      %p136 = scmp.eq.s32.totalorder %s26, 0
      %p137 = por %p135, %p136
      %s139 = sadd.s32 %s138, 1
      %p142 = scmp.eq.s32.totalorder %s20, 1
      %p143 = scmp.ne.s32.totalorder %s138, %s140
      %p144 = scmp.eq.s32.totalorder %s20, 0
      %p145 = por %p143, %p144
      %p146 = scmp.ne.s32.totalorder %s138, %s140
      %p147 = scmp.eq.s32.totalorder %s25, 1
      %p148 = por %p146, %p147
      %p149 = scmp.ne.s32.totalorder %s140, %s141
      %p150 = scmp.eq.s32.totalorder %s25, 0
      %p151 = por %p149, %p150
      %p152 = scmp.ne.s32.totalorder %s140, %s141
      %p153 = scmp.eq.s32.totalorder %s26, 1
      %p154 = por %p152, %p153
      %p156 = scmp.ne.s32.totalorder %s141, %s155
      %p157 = scmp.eq.s32.totalorder %s26, 0
      %p158 = por %p156, %p157
      %s160 = sadd.s32 %s159, 1
      %p163 = scmp.eq.s32.totalorder %s20, 1
      %p164 = scmp.ne.s32.totalorder %s159, %s161
      %p165 = scmp.eq.s32.totalorder %s20, 0
      %p166 = por %p164, %p165
      %p167 = scmp.ne.s32.totalorder %s159, %s161
      %p168 = scmp.eq.s32.totalorder %s25, 1
      %p169 = por %p167, %p168
      %p170 = scmp.ne.s32.totalorder %s161, %s162
      %p171 = scmp.eq.s32.totalorder %s25, 0
      %p172 = por %p170, %p171
      %p173 = scmp.ne.s32.totalorder %s161, %s162
      %p174 = scmp.eq.s32.totalorder %s26, 1
      %p175 = por %p173, %p174
      %p177 = scmp.ne.s32.totalorder %s162, %s176
      %p178 = scmp.eq.s32.totalorder %s26, 0
      %p179 = por %p177, %p178
      %s180 = ssub.s32 %s20, %s27
      %p181 = scmp.eq.s32.totalorder %s180, 0
      %s183 = sadd.s32 %s182, 1
      %s184 = scalar_select %p181, %s182, %s183
      %p187 = pneg %p181
      %p188 = scmp.eq.s32.totalorder %s20, 1
      %p189 = por %p187, %p188
      %p190 = scmp.ne.s32.totalorder %s182, %s185
      %p191 = scmp.eq.s32.totalorder %s20, 0
      %p192 = por %p190, %p191
      %p193 = scmp.ne.s32.totalorder %s182, %s185
      %p194 = scmp.eq.s32.totalorder %s25, 1
      %p195 = por %p193, %p194
      %p196 = scmp.ne.s32.totalorder %s185, %s186
      %p197 = scmp.eq.s32.totalorder %s25, 0
      %p198 = por %p196, %p197
      %p199 = scmp.ne.s32.totalorder %s185, %s186
      %p200 = scmp.eq.s32.totalorder %s26, 1
      %p201 = por %p199, %p200
      %p203 = scmp.ne.s32.totalorder %s186, %s202
      %p204 = scmp.eq.s32.totalorder %s26, 0
      %p205 = por %p203, %p204
      %p206 = scmp.le.s32.totalorder 1, %s20
      %p207 = scmp.lt.s32.totalorder %s20, 3
      %p208 = pnand %p206, %p207
      %p209 = pneg %p208
      // Predicated region
      $region9: #{tpu_custom_call.1} parent=5 // pred_check
        _
      $region10: #{tpu_custom_call.1} parent=5 // pred_check_branch
        %211 = sbr.rel (%p208) target = $region12
      $region11: #{tpu_custom_call.1} parent=5 // pred_region
        %s212 = ssub.s32 %s20, 1
        // Predicated region
        $region13: #{tpu_custom_call.1} parent=11 // pred_check
          %p213 = pneg %p67
        $region14: #{tpu_custom_call.1} parent=11 // pred_check_branch
          %215 = sbr.rel (%p213) target = $region16
        $region15: #{tpu_custom_call.1} parent=11 // pred_region
          _
        $region16: #{tpu_custom_call.1} parent=11 // pred_fallthru
          _
        // Predicated region
        $region17: #{tpu_custom_call.1} parent=11 // pred_check
          %p216 = pneg %p88
        $region18: #{tpu_custom_call.1} parent=11 // pred_check_branch
          %218 = sbr.rel (%p216) target = $region20
        $region19: #{tpu_custom_call.1} parent=11 // pred_region
          _
        $region20: #{tpu_custom_call.1} parent=11 // pred_fallthru
          _
        // Predicated region
        $region21: #{tpu_custom_call.1} parent=11 // pred_check
          %p219 = pneg %p109
        $region22: #{tpu_custom_call.1} parent=11 // pred_check_branch
          %221 = sbr.rel (%p219) target = $region24
        $region23: #{tpu_custom_call.1} parent=11 // pred_region
          _
        $region24: #{tpu_custom_call.1} parent=11 // pred_fallthru
          _
        // Predicated region
        $region25: #{tpu_custom_call.1} parent=11 // pred_check
          %p222 = pneg %p130
        $region26: #{tpu_custom_call.1} parent=11 // pred_check_branch
          %224 = sbr.rel (%p222) target = $region28
        $region27: #{tpu_custom_call.1} parent=11 // pred_region
          _
        $region28: #{tpu_custom_call.1} parent=11 // pred_fallthru
          _
        // Predicated region
        $region29: #{tpu_custom_call.1} parent=11 // pred_check
          %p225 = pneg %p151
        $region30: #{tpu_custom_call.1} parent=11 // pred_check_branch
          %227 = sbr.rel (%p225) target = $region32
        $region31: #{tpu_custom_call.1} parent=11 // pred_region
          _
        $region32: #{tpu_custom_call.1} parent=11 // pred_fallthru
          _
        // Predicated region
        $region33: #{tpu_custom_call.1} parent=11 // pred_check
          %p228 = pneg %p172
        $region34: #{tpu_custom_call.1} parent=11 // pred_check_branch
          %230 = sbr.rel (%p228) target = $region36
        $region35: #{tpu_custom_call.1} parent=11 // pred_region
          _
        $region36: #{tpu_custom_call.1} parent=11 // pred_fallthru
          _
      $region12: #{tpu_custom_call.1} parent=5 // pred_fallthru
        _
      %p231 = scmp.lt.s32.totalorder %s20, 2
      // Predicated region
      $region37: #{tpu_custom_call.1} parent=5 // pred_check
        %p232 = pneg %p231
      $region38: #{tpu_custom_call.1} parent=5 // pred_check_branch
        %234 = sbr.rel (%p232) target = $region40
      $region39: #{tpu_custom_call.1} parent=5 // pred_region
        // Predicated region
        $region41: #{tpu_custom_call.1} parent=39 // pred_check
          %p235 = pneg %p40
        $region42: #{tpu_custom_call.1} parent=39 // pred_check_branch
          %237 = sbr.rel (%p235) target = $region44
        $region43: #{tpu_custom_call.1} parent=39 // pred_region
          %p238 = scmp.lt.s32.totalorder %s20, 1
          %s239 = scalar_select %p238, %s20, 1
          %s240 = smul.addr %s239, 2
          %s241 = smul.addr %s240, 4
          %s242 = scalar_lea.vmem %s0, %s241
        $region44: #{tpu_custom_call.1} parent=39 // pred_fallthru
          _
      $region40: #{tpu_custom_call.1} parent=5 // pred_fallthru
        _
      %p243 = scmp.le.s32.totalorder 1, %s20
      %p244 = scmp.lt.s32.totalorder %s20, 3
      %p245 = pnand %p243, %p244
      %p246 = pneg %p245
      // Predicated region
      $region45: #{tpu_custom_call.1} parent=5 // pred_check
        _
      $region46: #{tpu_custom_call.1} parent=5 // pred_check_branch
        %248 = sbr.rel (%p245) target = $region48
      $region47: #{tpu_custom_call.1} parent=5 // pred_region
        %s249 = ssub.s32 %s20, 1
        %p250 = scmp.lt.s32.totalorder %s25, 1
        %s251 = scalar_select %p250, %s25, 1
        %s252 = smul.addr %s251, 2
        %s253 = smul.addr %s252, 4
        %s254 = scalar_lea.vmem %s0, %s253
        %p255 = pneg %p46
        %p256 = pneg %p43
        %p257 = pneg %p67
        %p258 = pneg %p64
        %p259 = pneg %p88
        %p260 = pneg %p85
        %p261 = pneg %p109
        %p262 = pneg %p106
        %p263 = pneg %p130
        %p264 = pneg %p127
        %p265 = pneg %p151
        %p266 = pneg %p148
        %p267 = pneg %p172
        %p268 = pneg %p169
        %p269 = pneg %p198
        %p270 = pneg %p195
        %s271 = sand.u32 %s185, 1
        %s272 = scalar_lea.sflag [#allocation5], %s271
        %s273 = sand.u32 %s185, 1
        %s274 = smul.addr %s273, 8
        %s275 = scalar_lea.vmem [#allocation4], %s274
        %p276 = scmp.lt.s32.totalorder %s25, 1
        %s277 = scalar_select %p276, %s25, 1
        %s278 = smul.addr %s277, 2
        %s279 = smul.addr %s278, 4
        %s280 = scalar_lea.vmem %s0, %s279
        %v281 = vld [vmem:[%s280] sm:$0xff]
        %v283 = vcombine.high %v281, %v281
        %vm285 = vcmask 1043456
        %v286 = vsel %vm285, %v281, 0.0
        %v287 = vsel %vm285, %v283, 0.0
        %v288 = vadd.f32 %v286, %v287
        %289 = vadd.xlane.f32.xlu0 %v288
        %v290 = vpop.xlane.xlu0 %289
        %v291 = vmul.f32 %v290, 0.00390625
        %v292 = vld [vmem:[%s1] sm:$0xf]
        %v293 = vld [vmem:[#allocation2] sm:$0x1]
        %v294 = vld [vmem:[%s3] sm:$0xf]
        %v295 = vld [vmem:[%s4] sm:$0x1]
        %v296 = vmul.f32 %v291, %v292
        %vm297 = vcmask 3072
        %v298 = vsel %vm297, %v296, 0.0
        %v299 = vrot.slane %v298, 4
        %v300 = vadd.f32 %v298, %v299
        %v301 = vrot.slane %v300, 2
        %v302 = vadd.f32 %v300, %v301
        %v303 = vrot.slane %v302, 1
        %v304 = vadd.f32 %v302, %v303
        %v305 = vadd.f32 %v304, %v293
        %v306 = vmax.f32 %v305, 0.0
        %v307 = vlaneseq
        %v308 = vshrl.u32 %v307, 7
        %v309 = vsub.s32 0, %v308
        %v310 = vrot.slane %v306, %v309
        %v311 = vmul.f32 %v310, %v294
        %v312 = vadd.f32 %v311, 0.0
        %v314 = vlaneseq
        %v315 = vshrl.u32 %v314, 7
        %v316 = vsub.s32 0, %v315
        %v317 = vrot.slane %v295, %v316
        %319 = vbcast.lane.b32.xlu0 %v317, 256
        %v320 = vpop.permute.xlu0 %319
        %v322 = vadd.f32 %v312, %v320
        %v323 = vxor.u32 %v322, 2147483648
        %v324 = vmul.f32 %v323, 1.442695
        %v325 = vpow.pop %v324
        %v326 = vadd.f32 %v325, 1.0
        %v327 = vrcp.pop %v326
        %v328 = vmul.f32 1.0, %v327
        %v329 = vld [vmem:[%s5] sm:$0xf]
        %331 = vset.pattern.permute.xlu0 0
        %332 = vperm.xlu0 %331, %v329
        %v333 = vpop.permute.xlu0 %332
        %v335 = vunpack.c.l.s4 839922192
        %v336 = vunpack.c.0.s8 %v335
        %v337 = vlaneseq
        %v338 = vshrl.u32 %v337, 7
        %v339 = vsub.s32 %v336, %v338
        %v340 = vrot.slane %v333, %v339
        %v342 = vmul.f32 %v281, %v340
        %v344 = vcombine.high %v342, %v342
        %v346 = vsel %vm285, %v342, 0.0
        %v347 = vrot.slane %v346, 4
        %v348 = vadd.f32 %v346, %v347
        %v349 = vrot.slane %v348, 2
        %v350 = vadd.f32 %v348, %v349
        %v351 = vrot.slane %v350, 1
        %v352 = vadd.f32 %v350, %v351
        %v353 = vsel %vm285, %v344, 0.0
        %v354 = vrot.slane %v353, 4
        %v355 = vadd.f32 %v353, %v354
        %v356 = vrot.slane %v355, 2
        %v357 = vadd.f32 %v355, %v356
        %v358 = vrot.slane %v357, 1
        %v359 = vadd.f32 %v357, %v358
        %v360 = vld [vmem:[#allocation3] sm:$0x1]
        %362 = vset.pattern.permute.xlu0 0
        %363 = vperm.xlu0 %362, %v360
        %v364 = vpop.permute.xlu0 %363
        %v366 = vlaneseq
        %v367 = vshrl.u32 %v366, 7
        %v368 = vsub.s32 0, %v367
        %v369 = vrot.slane %v364, %v368
        %v370 = vadd.f32 %v352, %v369
        %v371 = vadd.f32 %v359, %v369
        %v372 = vxor.u32 %v370, 2147483648
        %v373 = vxor.u32 %v371, 2147483648
        %v374 = vmul.f32 %v372, 1.442695
        %v375 = vpow.pop %v374
        %v376 = vmul.f32 %v373, 1.442695
        %v377 = vpow.pop %v376
        %v378 = vadd.f32 %v375, 1.0
        %v379 = vadd.f32 %v377, 1.0
        %v380 = vrcp.pop %v378
        %v381 = vmul.f32 1.0, %v380
        %v382 = vrcp.pop %v379
        %v383 = vmul.f32 1.0, %v382
        %385 = vset.pattern.permute.xlu0 0
        %386 = vperm.xlu0 %385, %v328
        %v387 = vpop.permute.xlu0 %386
        %v389 = vadd.f32 %v387, %v381
        %v390 = vadd.f32 %v387, %v383
        %v393 = vcombine.low %v389, %v390
        %v395 = vmul.f32 %v281, %v393
        %396 = vst [vmem:[%s275] sm:$0xff] %v395
        %s397 = sand.u32 %s185, 1
        %s398 = scalar_lea.sflag [#allocation5], %s397
        %s399 = sand.u32 %s185, 1
        %s400 = smul.addr %s399, 8
        %s401 = scalar_lea.vmem [#allocation4], %s400
        // Predicated region
        $region49: #{tpu_custom_call.1} parent=47 // pred_check
          %p402 = pneg %p195
        $region50: #{tpu_custom_call.1} parent=47 // pred_check_branch
          %404 = sbr.rel (%p402) target = $region52
        $region51: #{tpu_custom_call.1} parent=47 // pred_region
          %s406 = ssub.s32 128, 128
          %407 = vsyncadd %s398, %s406
          %s408 = smul.addr %s25, 2
          %s409 = smul.addr %s408, 64
          %s410 = scalar_lea.hbm %s7, %s409
          %s412 = sshll.u32 %s401, 4
          %s413 = int_to_ptr.vmem [resolvable:$true] %s412
          %415 = dma.vmem_to_hbm [thread:$0]  %s413, 128, %s410, %s398
        $region52: #{tpu_custom_call.1} parent=47 // pred_fallthru
          _
      $region48: #{tpu_custom_call.1} parent=5 // pred_fallthru
        _
      %p416 = scmp.le.s32.totalorder 2, %s20
      // Predicated region
      $region53: #{tpu_custom_call.1} parent=5 // pred_check
        %p417 = pneg %p416
      $region54: #{tpu_custom_call.1} parent=5 // pred_check_branch
        %419 = sbr.rel (%p417) target = $region56
      $region55: #{tpu_custom_call.1} parent=5 // pred_region
        %s420 = ssub.s32 %s20, 2
        // Predicated region
        $region57: #{tpu_custom_call.1} parent=55 // pred_check
          %p421 = pneg %p201
        $region58: #{tpu_custom_call.1} parent=55 // pred_check_branch
          %423 = sbr.rel (%p421) target = $region60
        $region59: #{tpu_custom_call.1} parent=55 // pred_region
          %s424 = sand.u32 %s186, 1
          %s425 = scalar_lea.sflag [#allocation5], %s424
          %s426 = sand.u32 %s186, 1
          %s427 = smul.addr %s426, 8
          %s428 = scalar_lea.vmem [#allocation4], %s427
          %429 = dma.done %s425, 128
        $region60: #{tpu_custom_call.1} parent=55 // pred_fallthru
          _
      $region56: #{tpu_custom_call.1} parent=5 // pred_fallthru
        _
    $region6: #{tpu_custom_call.1} parent=1 // loop_footer
      %s24 = sadd.s32 1, %s20
    $region7: #{tpu_custom_call.1} parent=1 // loop_footer_branch
      %19 = sbr.rel target = $region3
    $region8: #{tpu_custom_call.1} parent=1 // loop_exit
      _
    %430 = vsyncpa [#allocation5], 1
    %s431 = scalar_lea.sflag [#allocation5], 1
    %432 = vsyncpa %s431, 1

</llo_original>
